<compile_context>
chip_gen: v7x
topology: tpu7x:2x2x1
jax: 0.10.0
libtpu: 0.0.40
codegen_flags: <defaults>
</compile_context>

<pallas_src>
import jax
import jax.numpy as jnp
from jax.experimental import pallas as pl
from jax.experimental.pallas import tpu as pltpu


def _discriminator_head_kernel(x_ref, w_ref, b_ref, o_ref):
    # x_ref : [TB, C, HW]   (VMEM tile for this batch slice)
    # w_ref : [C, N]        (resident across the grid)
    # b_ref : [1, N]        (resident across the grid)
    # o_ref : [TB, N]
    hw = x_ref.shape[-1]
    # Global average pool over spatial (last, lane-dense) axis -> [TB, C].
    # f32-accumulating sum: no full-tile cast materialization for bf16 input.
    pooled = jnp.sum(x_ref[...], axis=-1, dtype=jnp.float32) * (1.0 / hw)
    # Classifier head on the MXU -> [TB, N], f32 accumulation.
    logits = jnp.dot(pooled, w_ref[...].astype(jnp.float32),
                     preferred_element_type=jnp.float32)
    logits = logits + b_ref[...].astype(jnp.float32)
    # Sigmoid: exp on the EUP, denominator reciprocal also on the EUP.
    probs = pl.reciprocal(1.0 + jnp.exp(-logits), approx=True)
    o_ref[...] = probs.astype(o_ref.dtype)


def discriminator_forward(x_nchw, weight, bias, *, batch_tile=64):
    """x_nchw: [B, C, H, W]; weight: [C, N]; bias: [N] -> sigmoid probs [B, N].

    weight may be bf16 (halves resident VMEM / HBM traffic); accumulation is
    always f32 inside the kernel.
    """
    B, C, H, W = x_nchw.shape
    C_w, N = weight.shape
    assert C_w == C, "weight must be [C, num_classes]"
    HW = H * W

    # Pad the classifier width to a multiple of 128 so output stores are
    # lane-dense (unmasked vst); slice the pad back off outside the kernel.
    N_pad = ((N + 127) // 128) * 128
    if N_pad != N:
        weight = jnp.pad(weight, ((0, 0), (0, N_pad - N)))
        bias = jnp.pad(bias, (0, N_pad - N))

    # Batch tile: multiple of 8 (sublane-aligned) or the full batch when B is
    # small / not divisible.  grid then iterates over batch tiles so Pallas
    # can double-buffer the x DMA against compute.
    if B % batch_tile == 0:
        TB = batch_tile
    elif B >= 8 and B % 8 == 0:
        TB = 8
    else:
        TB = B
    grid = (B // TB,)

    x_flat = x_nchw.reshape(B, C, HW)          # glue reshape in plain JAX
    bias2d = bias.reshape(1, N_pad)

    # VMEM budget: double-buffered x tile + resident weight/bias + out tiles,
    # with headroom; clamp so the request is always valid on v7x (64 MiB).
    x_bytes = TB * C * HW * jnp.dtype(x_flat.dtype).itemsize
    w_bytes = C * N_pad * jnp.dtype(weight.dtype).itemsize
    o_bytes = TB * N_pad * 4
    vmem_bytes = 2 * x_bytes + 2 * w_bytes + 2 * o_bytes + (2 << 20)
    vmem_bytes = int(max(min(vmem_bytes, 48 << 20), 8 << 20))

    out = pl.pallas_call(
        _discriminator_head_kernel,
        out_shape=jax.ShapeDtypeStruct((B, N_pad), jnp.float32),
        grid_spec=pltpu.PrefetchScalarGridSpec(
            num_scalar_prefetch=0,
            grid=grid,
            in_specs=[
                pl.BlockSpec((TB, C, HW), lambda i: (i, 0, 0)),
                pl.BlockSpec((C, N_pad), lambda i: (0, 0)),   # VMEM-resident
                pl.BlockSpec((1, N_pad), lambda i: (0, 0)),   # VMEM-resident
            ],
            out_specs=pl.BlockSpec((TB, N_pad), lambda i: (i, 0)),
        ),
        compiler_params=pltpu.CompilerParams(
            dimension_semantics=("parallel",),
            vmem_limit_bytes=vmem_bytes,
        ),
    )(x_flat, weight, bias2d)

    return out[:, :N] if N_pad != N else out


if __name__ == "__main__":
    key = jax.random.PRNGKey(0)
    k_x, k_w, k_b = jax.random.split(key, 3)

    # Small shapes consistent with an NCHW conv-net input.
    B, C, H, W = 2, 4, 16, 16
    NUM_CLASSES = 128  # small stand-in for inception's 1000-class head

    x = jax.random.normal(k_x, (B, C, H, W), dtype=jnp.float32)
    weight = jax.random.normal(k_w, (C, NUM_CLASSES), dtype=jnp.float32) * 0.1
    bias = jax.random.normal(k_b, (NUM_CLASSES,), dtype=jnp.float32) * 0.1

    out = discriminator_forward(x, weight, bias)
    out = jax.block_until_ready(out)

    # Correctness check against pure JAX reference (tolerance loosened only
    # for the approx EUP reciprocal in the sigmoid epilogue).
    pooled_ref = jnp.mean(x.reshape(B, C, H * W), axis=-1)
    ref = jax.nn.sigmoid(pooled_ref @ weight + bias[None, :])
    assert out.shape == (B, NUM_CLASSES)
    assert jnp.allclose(out, ref, atol=2e-3, rtol=2e-3)

    print("KERNEL_OK")
</pallas_src>

<mosaic_0001>
module attributes {stable_mosaic.version = 11 : i64} {
  func.func @_discriminator_head_kernel(%arg0: i32, %arg1: memref<2x4x256xf32, #tpu.memory_space<vmem>>, %arg2: memref<4x128xf32, #tpu.memory_space<vmem>>, %arg3: memref<1x128xf32, #tpu.memory_space<vmem>>, %arg4: memref<2x128xf32, #tpu.memory_space<vmem>>) attributes {dimension_semantics = [#tpu.dimension_semantics<parallel>], iteration_bounds = array<i64: 1>, scalar_prefetch = 0 : i64, scratch_operands = 0 : i64, tpu.core_type = #tpu.core_type<tc>, window_params = [{transform_indices = @transform_0, window_bounds = array<i64: 2, 4, 256>}, {pipeline_mode = #tpu.pipeline_mode<synchronous>, transform_indices = @transform_1, window_bounds = array<i64: 4, 128>}, {pipeline_mode = #tpu.pipeline_mode<synchronous>, transform_indices = @transform_2, window_bounds = array<i64: 1, 128>}, {transform_indices = @transform_3, window_bounds = array<i64: 2, 128>}]} {
    %c0 = arith.constant 0 : index
    %c0_0 = arith.constant 0 : index
    %c0_1 = arith.constant 0 : index
    %0 = vector.load %arg1[%c0, %c0_0, %c0_1] : memref<2x4x256xf32, #tpu.memory_space<vmem>>, vector<2x4x256xf32>
    %cst = arith.constant dense<0.000000e+00> : vector<2x4xf32>
    %1 = vector.multi_reduction <add>, %0, %cst [2] : vector<2x4x256xf32> to vector<2x4xf32>
    %cst_2 = arith.constant 3.906250e-03 : f32
    %2 = vector.broadcast %cst_2 : f32 to vector<2x4xf32>
    %3 = arith.mulf %1, %2 : vector<2x4xf32>
    %c0_3 = arith.constant 0 : index
    %c0_4 = arith.constant 0 : index
    %4 = vector.load %arg2[%c0_3, %c0_4] : memref<4x128xf32, #tpu.memory_space<vmem>>, vector<4x128xf32>
    %cst_5 = arith.constant dense<0.000000e+00> : vector<2x128xf32>
    %5 = tpu.matmul %3, %4, %cst_5 {dimension_numbers = #tpu.dot_dimension_numbers<[1], [0], [0], [1], [0, 0, 1, 1], [], []>} : vector<2x4xf32>, vector<4x128xf32>, vector<2x128xf32> -> vector<2x128xf32>
    %c0_6 = arith.constant 0 : index
    %c0_7 = arith.constant 0 : index
    %6 = vector.load %arg3[%c0_6, %c0_7] : memref<1x128xf32, #tpu.memory_space<vmem>>, vector<1x128xf32>
    %7 = vector.broadcast %6 : vector<1x128xf32> to vector<2x128xf32>
    %8 = arith.addf %5, %7 : vector<2x128xf32>
    %cst_8 = arith.constant 0.000000e+00 : f32
    %9 = vector.broadcast %cst_8 : f32 to vector<2x128xf32>
    %10 = arith.subf %9, %8 : vector<2x128xf32>
    %11 = math.exp %10 : vector<2x128xf32>
    %cst_9 = arith.constant 1.000000e+00 : f32
    %12 = vector.broadcast %cst_9 : f32 to vector<2x128xf32>
    %13 = arith.addf %12, %11 : vector<2x128xf32>
    %14 = tpu.reciprocal %13 {approx = true} : vector<2x128xf32> -> vector<2x128xf32>
    %c0_10 = arith.constant 0 : index
    %c0_11 = arith.constant 0 : index
    %15 = vector.load %arg4[%c0_10, %c0_11] : memref<2x128xf32, #tpu.memory_space<vmem>>, vector<2x128xf32>
    tpu.vector_store %arg4[%c0_10, %c0_11], %14 {strides = array<i32>} : memref<2x128xf32, #tpu.memory_space<vmem>>, vector<2x128xf32>,
    return
  }
  func.func @transform_0(%arg0: i32) -> (i32, i32, i32) {
    %c0_i32 = arith.constant 0 : i32
    %c0_i32_0 = arith.constant 0 : i32
    %c0_i32_1 = arith.constant 0 : i32
    return %arg0, %c0_i32, %c0_i32_0 : i32, i32, i32
  }
  func.func @transform_1(%arg0: i32) -> (i32, i32) {
    %c0_i32 = arith.constant 0 : i32
    %c0_i32_0 = arith.constant 0 : i32
    %c0_i32_1 = arith.constant 0 : i32
    return %c0_i32, %c0_i32_0 : i32, i32
  }
  func.func @transform_2(%arg0: i32) -> (i32, i32) {
    %c0_i32 = arith.constant 0 : i32
    %c0_i32_0 = arith.constant 0 : i32
    %c0_i32_1 = arith.constant 0 : i32
    return %c0_i32, %c0_i32_0 : i32, i32
  }
  func.func @transform_3(%arg0: i32) -> (i32, i32) {
    %c0_i32 = arith.constant 0 : i32
    %c0_i32_0 = arith.constant 0 : i32
    return %arg0, %c0_i32 : i32, i32
  }
}

</mosaic_0001>

<llo_original>
// kernel: tpu_custom_call.1
$region0: #{tpu_custom_call.1}
  #allocation0 [shape = 'u32[]', space=smem, size = 0x4, offset = 0x4, fixed_abs, tag = 'smem constant byte address 0x4 - core index']
  #allocation1 [shape = 'u32[144,128]{1,0:T(1,128)}', space=vmem, size = 0x12000, scoped, tag = 'internal scratch']
  %s0 = inlined_call_operand.hbm [shape: f32[2,4,256], index: 0, kind: input, shape index: {}]
  %s1 = inlined_call_operand.hbm [shape: f32[4,128], index: 1, kind: input, shape index: {}]
  %s2 = inlined_call_operand.vmem [shape: f32[1,128], index: 2, kind: input, shape index: {}]
  %s3 = inlined_call_operand.hbm [shape: f32[2,128], index: 3, kind: output, shape index: {}]
  %s4 = sld [smem:[#allocation0]]
  $region30: #{tpu_custom_call.1} parent=0
    _
  %s6 = ssub.s32 1, %s4
  %s7 = scalar_select 0, %s6, %s4
  $region1: #{tpu_custom_call.1} parent=0
    #allocation2 [shape = 'u8[8192]{0}', space=vmem, size = 0x2000, scoped, tag = 'input window, operand 0, single buffered']
    #allocation3 [shape = 's32[1]{0}', space=sflag, size = 0x4, scoped, tag = 'scoped memory for tpu_custom_call.1']
    #allocation4 [shape = 's32[1]{0}', space=sflag, size = 0x4, scoped, tag = 'scoped memory for tpu_custom_call.1']
    #allocation5 [shape = 'u8[2048]{0}', space=vmem, size = 0x800, scoped, tag = 'input window, operand 1, single buffered']
    #allocation6 [shape = 's32[1]{0}', space=sflag, size = 0x4, scoped, tag = 'scoped memory for tpu_custom_call.1']
    #allocation7 [shape = 'u8[1024]{0}', space=vmem, size = 0x400, scoped, tag = 'output window, operand 0, single buffered']
    %8 = vsyncpa [#allocation3], 0
    %9 = vsyncpa [#allocation6], 0
    %10 = vsyncpa [#allocation4], 0
    // Predicated region
    $region2: #{tpu_custom_call.1} parent=1 // pred_check
      _
    $region3: #{tpu_custom_call.1} parent=1 // pred_check_branch
      %12 = sbr.rel (0) target = $region5
    $region4: #{tpu_custom_call.1} parent=1 // pred_region
      %s14 = ssub.s32 256, 256
      %15 = vsyncadd [#allocation3], %s14
      %s16 = sshll.u32 [#allocation2], 4
      %s17 = int_to_ptr.vmem [resolvable:$true] %s16
      %22 = dma.hbm_to_vmem [thread:$0]  %s0, 256, %s17, [#allocation3], 128, 128, 8
    $region5: #{tpu_custom_call.1} parent=1 // pred_fallthru
      _
    // Predicated region
    $region6: #{tpu_custom_call.1} parent=1 // pred_check
      _
    $region7: #{tpu_custom_call.1} parent=1 // pred_check_branch
      %24 = sbr.rel (0) target = $region9
    $region8: #{tpu_custom_call.1} parent=1 // pred_region
      %s26 = ssub.s32 64, 64
      %27 = vsyncadd [#allocation6], %s26
      %s29 = sshll.u32 [#allocation5], 4
      %s30 = int_to_ptr.vmem [resolvable:$true] %s29
      %32 = dma.hbm_to_vmem [thread:$0]  %s1, 64, %s30, [#allocation6]
    $region9: #{tpu_custom_call.1} parent=1 // pred_fallthru
      _
    // Predicated region
    $region10: #{tpu_custom_call.1} parent=1 // pred_check
      _
    $region11: #{tpu_custom_call.1} parent=1 // pred_check_branch
      %34 = sbr.rel (0) target = $region13
    $region12: #{tpu_custom_call.1} parent=1 // pred_region
      _
    $region13: #{tpu_custom_call.1} parent=1 // pred_fallthru
      _
    // Predicated region
    $region14: #{tpu_custom_call.1} parent=1 // pred_check
      _
    $region15: #{tpu_custom_call.1} parent=1 // pred_check_branch
      %36 = sbr.rel (0) target = $region17
    $region16: #{tpu_custom_call.1} parent=1 // pred_region
      %37 = dma.done [#allocation3], 256
    $region17: #{tpu_custom_call.1} parent=1 // pred_fallthru
      _
    // Predicated region
    $region18: #{tpu_custom_call.1} parent=1 // pred_check
      _
    $region19: #{tpu_custom_call.1} parent=1 // pred_check_branch
      %39 = sbr.rel (0) target = $region21
    $region20: #{tpu_custom_call.1} parent=1 // pred_region
      %40 = dma.done [#allocation6], 64
    $region21: #{tpu_custom_call.1} parent=1 // pred_fallthru
      _
    %v41 = vld [vmem:[#allocation2] sm:$0xff]
    %v42 = vld [vmem:[#allocation2 + $0x8] sm:$0xff]
    %v45 = vcombine.high %v41, %v41
    %v46 = vcombine.high %v42, %v42
    %vm49 = vcmask 1043456
    %v50 = vsel %vm49, %v41, 0.0
    %v51 = vsel %vm49, %v45, 0.0
    %v52 = vadd.f32 %v50, %v51
    %53 = vadd.xlane.f32.xlu0 %v52
    %v54 = vpop.xlane.xlu0 %53
    %v55 = vsel %vm49, %v42, 0.0
    %v56 = vsel %vm49, %v46, 0.0
    %v57 = vadd.f32 %v55, %v56
    %58 = vadd.xlane.f32.xlu0 %v57
    %v59 = vpop.xlane.xlu0 %58
    %v60 = vmul.f32 %v54, 0.00390625
    %v61 = vmul.f32 %v59, 0.00390625
    %v62 = vld [vmem:[#allocation5] sm:$0xf]
    %v63 = vld [vmem:[%s2] sm:$0x1]
    %v65 = vlaneseq
    %v66 = vshrl.u32 %v65, 7
    %v67 = vsub.s32 0, %v66
    %v68 = vrot.slane %v63, %v67
    %v72 = vlaneseq
    %v73 = vand.u32 %v72, 127
    %v74 = vlaneseq
    %v75 = vshrl.u32 %v74, 7
    %v76 = vsub.s32 %v73, %v75
    %v77 = vrot.slane %v60, %v76
    %v78 = vlaneseq
    %v79 = vshrl.u32 %v78, 7
    %v80 = vsub.s32 %v73, %v79
    %v81 = vrot.slane %v61, %v80
    %vm82 = vcmask 1041409
    %v83 = vsel %vm82, %v81, %v77
    %vm84 = vcmask 31744
    %v85 = vsel %vm84, %v83, 0
    %v88 = vsel %vm49, %v62, 0
    %90 = vmatprep.subr.mxu0 0.0
    %91 = vmatpush1.msra.mxu0 %v88
    %92 = vmatprep.subr.mxu0 0.0
    %93 = vmatpush1.msra.mxu0 0.0
    %94 = vmatprep.subr.mxu0 0.0
    %95 = vmatpush1.msra.mxu0 0.0
    %96 = vmatprep.subr.mxu0 0.0
    %97 = vmatpush1.msra.mxu0 0.0
    %98 = vmatprep.subr.mxu0 0.0
    %99 = vmatpush1.msra.mxu0 0.0
    %100 = vmatprep.subr.mxu0 0.0
    %101 = vmatpush1.msra.mxu0 0.0
    %102 = vmatprep.subr.mxu0 0.0
    %103 = vmatpush1.msra.mxu0 0.0
    %104 = vmatprep.subr.mxu0 0.0
    %105 = vmatpush1.msra.mxu0 0.0
    %106 = vmatprep.subr.mxu0 0.0
    %107 = vmatpush1.msra.mxu0 0.0
    %108 = vmatprep.subr.mxu0 0.0
    %109 = vmatpush1.msra.mxu0 0.0
    %110 = vmatprep.subr.mxu0 0.0
    %111 = vmatpush1.msra.mxu0 0.0
    %112 = vmatprep.subr.mxu0 0.0
    %113 = vmatpush1.msra.mxu0 0.0
    %114 = vmatprep.subr.mxu0 0.0
    %115 = vmatpush1.msra.mxu0 0.0
    %116 = vmatprep.subr.mxu0 0.0
    %117 = vmatpush1.msra.mxu0 0.0
    %118 = vmatprep.subr.mxu0 0.0
    %119 = vmatpush1.msra.mxu0 0.0
    %120 = vmatprep.subr.mxu0 0.0
    %121 = vmatpush1.msra.mxu0 0.0
    %122 = vmatprep.subr.mxu0 0.0
    %123 = vmatpush1.msra.mxu0 0.0
    %124 = vmatprep.subr.mxu0 0.0
    %125 = vmatpush1.msra.mxu0 0.0
    %126 = vmatprep.subr.mxu0 0.0
    %127 = vmatpush1.msra.mxu0 0.0
    %128 = vmatprep.subr.mxu0 0.0
    %129 = vmatpush1.msra.mxu0 0.0
    %130 = vmatprep.subr.mxu0 0.0
    %131 = vmatpush1.msra.mxu0 0.0
    %132 = vmatprep.subr.mxu0 0.0
    %133 = vmatpush1.msra.mxu0 0.0
    %134 = vmatprep.subr.mxu0 0.0
    %135 = vmatpush1.msra.mxu0 0.0
    %136 = vmatprep.subr.mxu0 0.0
    %137 = vmatpush1.msra.mxu0 0.0
    %138 = vmatprep.subr.mxu0 0.0
    %139 = vmatpush1.msra.mxu0 0.0
    %140 = vmatprep.subr.mxu0 0.0
    %141 = vmatpush1.msra.mxu0 0.0
    %142 = vmatprep.subr.mxu0 0.0
    %143 = vmatpush1.msra.mxu0 0.0
    %144 = vmatprep.subr.mxu0 0.0
    %145 = vmatpush1.msra.mxu0 0.0
    %146 = vmatprep.subr.mxu0 0.0
    %147 = vmatpush1.msra.mxu0 0.0
    %148 = vmatprep.subr.mxu0 0.0
    %149 = vmatpush1.msra.mxu0 0.0
    %150 = vmatprep.subr.mxu0 0.0
    %151 = vmatpush1.msra.mxu0 0.0
    %152 = vmatprep.subr.mxu0 0.0
    %153 = vmatpush1.msra.mxu0 0.0
    %154 = vmatprep.mubr.f32.mxu0 0.0
    %155 = vmatmul.mubr.f32.gmra.mrb[0].mxu0 %v85
    %v156 = vpop.f32.mrb[0].mxu0
    %v157 = vadd.f32 %v68, %v156
    %v158 = vpop.f32.mrb[0].mxu0
    %159 = vdwg.mxu0
    %v160 = vsub.f32 0.0, %v157
    %v161 = vmul.f32 %v160, 1.442695
    %v162 = vpow.pop %v161
    %v163 = vadd.f32 %v162, 1.0
    %v164 = vrcp.pop %v163
    %165 = vst [vmem:[#allocation7] sm:$0x3] %v164
    // Predicated region
    $region22: #{tpu_custom_call.1} parent=1 // pred_check
      _
    $region23: #{tpu_custom_call.1} parent=1 // pred_check_branch
      %167 = sbr.rel (0) target = $region25
    $region24: #{tpu_custom_call.1} parent=1 // pred_region
      %s169 = ssub.s32 32, 32
      %170 = vsyncadd [#allocation4], %s169
      %s172 = sshll.u32 [#allocation7], 4
      %s173 = int_to_ptr.vmem [resolvable:$true] %s172
      %175 = dma.vmem_to_hbm [thread:$0]  %s173, 32, %s3, [#allocation4]
    $region25: #{tpu_custom_call.1} parent=1 // pred_fallthru
      _
    // Predicated region
    $region26: #{tpu_custom_call.1} parent=1 // pred_check
      _
    $region27: #{tpu_custom_call.1} parent=1 // pred_check_branch
      %177 = sbr.rel (0) target = $region29
    $region28: #{tpu_custom_call.1} parent=1 // pred_region
      %178 = dma.done [#allocation4], 32
    $region29: #{tpu_custom_call.1} parent=1 // pred_fallthru
      _
    %179 = vsyncpa [#allocation3], 1
    %180 = vsyncpa [#allocation6], 1
    %181 = vsyncpa [#allocation4], 1

</llo_original>
